<compile_context>
chip_gen: v6e
topology: v6e:2x2x1
jax: 0.10.0
libtpu: 0.0.40
codegen_flags: <defaults>
</compile_context>

<pallas_src>
import functools

import jax
import jax.numpy as jnp
from jax.experimental import pallas as pl
from jax.experimental.pallas import tpu as pltpu


def _linear_add_kernel(x_ref, params_ref, o_ref):
    # x_ref     : SMEM (B, Cin)       -- activations, read element-wise as scalars
    # params_ref: VMEM (Cin+1, Cout)  -- rows 0..Cin-1 = W^T, row Cin = bias + other
    # o_ref     : VMEM (B, Cout)
    B, Cin = x_ref.shape
    bias_other = params_ref[Cin:Cin + 1, :]            # (1, Cout), static slice
    for b in range(B):                                  # B is tiny & static -> unroll
        acc = bias_other
        for k in range(Cin):                            # K=3 unrolled scalar-splat FMAs (VPU only)
            acc = acc + x_ref[b, k] * params_ref[k:k + 1, :]
        o_ref[b:b + 1, :] = acc


def pack_params(w, b, other):
    """One-time parameter packing (do this ONCE, outside the per-call path).

    w:     (Cout, Cin)  -- PyTorch Linear.weight layout
    b:     (Cout,)      -- Linear.bias
    other: (1, Cout)    -- the extra Parameter added to the output
    Returns a single (Cin+1, Cout) block: rows 0..Cin-1 = w.T, last row = b + other.
    """
    Cout, Cin = w.shape
    bias_other = b.reshape(1, Cout) + other.reshape(1, Cout)
    return jnp.concatenate([w.T, bias_other], axis=0)   # (Cin+1, Cout)


@jax.jit
def linear_add(x, packed_params):
    """Pallas equivalent of torch: Linear(Cin, Cout)(x) + other.

    x:             (B, Cin)
    packed_params: (Cin+1, Cout)  -- from pack_params(), cached across calls
    """
    B, Cin = x.shape
    Cout = packed_params.shape[1]

    cost = pl.CostEstimate(
        flops=2 * B * Cin * Cout + B * Cout,
        transcendentals=0,
        bytes_accessed=(x.size + packed_params.size + B * Cout) * x.dtype.itemsize,
    )

    return pl.pallas_call(
        _linear_add_kernel,
        out_shape=jax.ShapeDtypeStruct((B, Cout), x.dtype),
        in_specs=[
            pl.BlockSpec(memory_space=pltpu.MemorySpace.SMEM),   # x: scalar reads
            pl.BlockSpec(memory_space=pltpu.MemorySpace.VMEM),   # packed W^T | bias+other
        ],
        out_specs=pl.BlockSpec(memory_space=pltpu.MemorySpace.VMEM),
        cost_estimate=cost,
    )(x, packed_params)


if __name__ == "__main__":
    key = jax.random.PRNGKey(0)
    k_x, k_w, k_b, k_other = jax.random.split(key, 4)

    # Deterministic synthetic parameters matching torch.nn.Linear(3, 7) shapes.
    x1 = jax.random.normal(k_x, (1, 3), dtype=jnp.float32)             # input  (1, 3)
    weight = jax.random.normal(k_w, (7, 3), dtype=jnp.float32) * 0.5   # Linear.weight (7, 3)
    bias = jax.random.normal(k_b, (7,), dtype=jnp.float32) * 0.1       # Linear.bias   (7,)
    other = jax.random.uniform(k_other, (1, 7), dtype=jnp.float32)     # Parameter(rand(1, 7))

    # One-time parameter packing (cached; not part of the per-call path).
    packed = jax.block_until_ready(pack_params(weight, bias, other))   # (4, 7)

    out = linear_add(x1, packed)
    out = jax.block_until_ready(out)

    # Reference check in plain JAX.
    ref = x1 @ weight.T + bias.reshape(1, 7) + other
    assert out.shape == (1, 7)
    assert jnp.allclose(out, ref, atol=1e-5), (out, ref)

    print("KERNEL_OK")
</pallas_src>

<mosaic_0001>
module attributes {stable_mosaic.version = 11 : i64} {
  func.func @_linear_add_kernel(%arg0: memref<1x3xf32, #tpu.memory_space<smem>>, %arg1: memref<4x7xf32, #tpu.memory_space<vmem>>, %arg2: memref<1x7xf32, #tpu.memory_space<vmem>>) attributes {dimension_semantics = [], scalar_prefetch = 0 : i64, scratch_operands = 0 : i64, tpu.core_type = #tpu.core_type<tc>} {
    %c3 = arith.constant 3 : index
    %c0 = arith.constant 0 : index
    %0 = vector.load %arg1[%c3, %c0] : memref<4x7xf32, #tpu.memory_space<vmem>>, vector<1x7xf32>
    %c0_0 = arith.constant 0 : index
    %c0_1 = arith.constant 0 : index
    %1 = memref.load %arg0[%c0_0, %c0_1] : memref<1x3xf32, #tpu.memory_space<smem>>
    %c0_2 = arith.constant 0 : index
    %c0_3 = arith.constant 0 : index
    %2 = vector.load %arg1[%c0_2, %c0_3] : memref<4x7xf32, #tpu.memory_space<vmem>>, vector<1x7xf32>
    %3 = vector.broadcast %1 : f32 to vector<1x7xf32>
    %4 = arith.mulf %3, %2 : vector<1x7xf32>
    %5 = arith.addf %0, %4 : vector<1x7xf32>
    %c0_4 = arith.constant 0 : index
    %c1 = arith.constant 1 : index
    %6 = memref.load %arg0[%c0_4, %c1] : memref<1x3xf32, #tpu.memory_space<smem>>
    %c1_5 = arith.constant 1 : index
    %c0_6 = arith.constant 0 : index
    %7 = vector.load %arg1[%c1_5, %c0_6] : memref<4x7xf32, #tpu.memory_space<vmem>>, vector<1x7xf32>
    %8 = vector.broadcast %6 : f32 to vector<1x7xf32>
    %9 = arith.mulf %8, %7 : vector<1x7xf32>
    %10 = arith.addf %5, %9 : vector<1x7xf32>
    %c0_7 = arith.constant 0 : index
    %c2 = arith.constant 2 : index
    %11 = memref.load %arg0[%c0_7, %c2] : memref<1x3xf32, #tpu.memory_space<smem>>
    %c2_8 = arith.constant 2 : index
    %c0_9 = arith.constant 0 : index
    %12 = vector.load %arg1[%c2_8, %c0_9] : memref<4x7xf32, #tpu.memory_space<vmem>>, vector<1x7xf32>
    %13 = vector.broadcast %11 : f32 to vector<1x7xf32>
    %14 = arith.mulf %13, %12 : vector<1x7xf32>
    %15 = arith.addf %10, %14 : vector<1x7xf32>
    %c0_10 = arith.constant 0 : index
    %c0_11 = arith.constant 0 : index
    %16 = vector.load %arg2[%c0_10, %c0_11] : memref<1x7xf32, #tpu.memory_space<vmem>>, vector<1x7xf32>
    tpu.vector_store %arg2[%c0_10, %c0_11], %15 {strides = array<i32>} : memref<1x7xf32, #tpu.memory_space<vmem>>, vector<1x7xf32>,
    return
  }
}

</mosaic_0001>

<llo_original>
// kernel: linear_add.1
$region0: #{linear_add.1}
  #allocation0 [shape = 'u32[]', space=smem, size = 0x4, offset = 0x4, fixed_abs, tag = 'smem constant byte address 0x4 - core index']
  #allocation1 [shape = 'u32[144,128]{1,0:T(1,128)}', space=vmem, size = 0x12000, scoped, tag = 'internal scratch']
  %s0 = inlined_call_operand.hbm [shape: f32[1,3], index: 0, kind: input, shape index: {}]
  %s1 = inlined_call_operand.hbm [shape: f32[4,7], index: 1, kind: input, shape index: {}]
  %s2 = inlined_call_operand.hbm [shape: f32[1,7], index: 2, kind: output, shape index: {}]
  %s3 = sld [smem:[#allocation0]]
  $region26: #{linear_add.1} parent=0
    _
  %s5 = ssub.s32 1, %s3
  %s6 = scalar_select 0, %s5, %s3
  $region1: #{linear_add.1} parent=0
    #allocation2 [shape = 'u8[512]{0}', space=smem, size = 0x200, scoped, tag = 'input window, operand 0, single buffered']
    #allocation3 [shape = 's32[1]{0}', space=sflag, size = 0x4, scoped, tag = 'scoped memory for linear_add.1']
    #allocation4 [shape = 's32[1]{0}', space=sflag, size = 0x4, scoped, tag = 'scoped memory for linear_add.1']
    #allocation5 [shape = 's32[1]{0}', space=sflag, size = 0x4, scoped, tag = 'scoped memory for linear_add.1']
    #allocation6 [shape = 'u8[2048]{0}', space=vmem, size = 0x800, scoped, tag = 'input window, operand 1, single buffered']
    #allocation7 [shape = 'u8[512]{0}', space=vmem, size = 0x400, scoped, tag = 'output window, operand 0, single buffered']
    %7 = vsyncpa [#allocation5], 0
    %8 = vsyncpa [#allocation3], 0
    %9 = vsyncpa [#allocation4], 0
    // Predicated region
    $region2: #{linear_add.1} parent=1 // pred_check
      _
    $region3: #{linear_add.1} parent=1 // pred_check_branch
      %11 = sbr.rel (0) target = $region5
    $region4: #{linear_add.1} parent=1 // pred_region
      %s13 = ssub.s32 16, 16
      %14 = vsyncadd [#allocation5], %s13
      %17 = dma.hbm_to_smem %s0, 16, [#allocation2], [#allocation5]
    $region5: #{linear_add.1} parent=1 // pred_fallthru
      _
    // Predicated region
    $region6: #{linear_add.1} parent=1 // pred_check
      _
    $region7: #{linear_add.1} parent=1 // pred_check_branch
      %19 = sbr.rel (0) target = $region9
    $region8: #{linear_add.1} parent=1 // pred_region
      %s21 = ssub.s32 64, 64
      %22 = vsyncadd [#allocation3], %s21
      %s24 = sshll.u32 [#allocation6], 4
      %s25 = int_to_ptr.vmem [resolvable:$true] %s24
      %27 = dma.hbm_to_vmem [thread:$0]  %s1, 64, %s25, [#allocation3]
    $region9: #{linear_add.1} parent=1 // pred_fallthru
      _
    // Predicated region
    $region10: #{linear_add.1} parent=1 // pred_check
      _
    $region11: #{linear_add.1} parent=1 // pred_check_branch
      %29 = sbr.rel (0) target = $region13
    $region12: #{linear_add.1} parent=1 // pred_region
      %30 = dma.done [#allocation5], 16
    $region13: #{linear_add.1} parent=1 // pred_fallthru
      _
    // Predicated region
    $region14: #{linear_add.1} parent=1 // pred_check
      _
    $region15: #{linear_add.1} parent=1 // pred_check_branch
      %32 = sbr.rel (0) target = $region17
    $region16: #{linear_add.1} parent=1 // pred_region
      %33 = dma.done [#allocation3], 64
    $region17: #{linear_add.1} parent=1 // pred_fallthru
      _
    %34 = sfence
    %v35 = vld [vmem:[#allocation6 + $0x3] sm:$0x1]
    %s36 = sld [smem:[#allocation2]]
    %v37 = vld [vmem:[#allocation6] sm:$0x1]
    %v38 = vstv %s36
    %v39 = vmul.f32 %v38, %v37
    %v40 = vadd.f32 %v35, %v39
    %s41 = sld [smem:[#allocation2 + $0x1]]
    %v42 = vld [vmem:[#allocation6 + $0x1] sm:$0x1]
    %v43 = vstv %s41
    %v44 = vmul.f32 %v43, %v42
    %v45 = vadd.f32 %v40, %v44
    %s46 = sld [smem:[#allocation2 + $0x2]]
    %v47 = vld [vmem:[#allocation6 + $0x2] sm:$0x1]
    %v48 = vstv %s46
    %v49 = vmul.f32 %v48, %v47
    %v50 = vadd.f32 %v45, %v49
    %vm51 = vcmask 49152
    %52 = vst.msk [vmem:[#allocation7] sm:$0x1] %vm51, %v50
    // Predicated region
    $region18: #{linear_add.1} parent=1 // pred_check
      _
    $region19: #{linear_add.1} parent=1 // pred_check_branch
      %54 = sbr.rel (0) target = $region21
    $region20: #{linear_add.1} parent=1 // pred_region
      %s56 = ssub.s32 16, 16
      %57 = vsyncadd [#allocation4], %s56
      %s59 = sshll.u32 [#allocation7], 4
      %s60 = int_to_ptr.vmem [resolvable:$true] %s59
      %62 = dma.vmem_to_hbm [thread:$0]  %s60, 16, %s2, [#allocation4]
    $region21: #{linear_add.1} parent=1 // pred_fallthru
      _
    // Predicated region
    $region22: #{linear_add.1} parent=1 // pred_check
      _
    $region23: #{linear_add.1} parent=1 // pred_check_branch
      %64 = sbr.rel (0) target = $region25
    $region24: #{linear_add.1} parent=1 // pred_region
      %65 = dma.done [#allocation4], 16
    $region25: #{linear_add.1} parent=1 // pred_fallthru
      _
    %66 = vsyncpa [#allocation3], 1
    %67 = vsyncpa [#allocation4], 1
    %68 = vsyncpa [#allocation5], 1

</llo_original>
